<compile_context>
chip_gen: v5e
topology: v5e:2x2
jax: 0.10.0
libtpu: 0.0.40
codegen_flags: <defaults>
</compile_context>

<pallas_src>
import functools

import jax
import jax.numpy as jnp
from jax.experimental import pallas as pl
from jax.experimental.pallas import tpu as pltpu


def _soft_threshold_matmul_kernel(s_ref, x_ref, w_ref, o_ref, acc_ref, *,
                                  tk, full_k_w, dot_dtype):
    # Grid: (n, m, k) with k (the contraction axis) last.
    k = pl.program_id(2)

    @pl.when(k == 0)
    def _init_acc():
        acc_ref[...] = jnp.zeros_like(acc_ref)

    thr = jax.nn.sigmoid(s_ref[0, 0])

    if full_k_w:
        # W ref holds the whole-K stripe for this n (fetched once per n-stripe);
        # slice out the current (tk, tn) view.
        start = pl.multiple_of(k * tk, tk)
        w = w_ref[pl.ds(start, tk), :]
    else:
        w = w_ref[...]

    # sign(w) * relu(|w| - thr)  ==  w - clip(w, -thr, thr)   (thr = sigmoid(s) > 0)
    sw = w - jnp.clip(w, -thr, thr)

    acc_ref[...] += jnp.dot(
        x_ref[...].astype(dot_dtype),
        sw.astype(dot_dtype),
        preferred_element_type=jnp.float32,
    )

    @pl.when(k == pl.num_programs(2) - 1)
    def _writeback():
        o_ref[...] = acc_ref[...].astype(o_ref.dtype)


def _round_up(v, m):
    return (v + m - 1) // m * m


def _vmem_capacity_bytes():
    try:
        return int(pltpu.get_tpu_info().vmem_capacity_bytes)
    except Exception:
        return 64 << 20  # conservative (v7x per-TC)


def soft_threshold_layer(x, weight, s, *, tm=512, tn=None, tk=1024,
                         dot_dtype=jnp.bfloat16):
    """x: (B, in_features), weight: (in_features, out_features), s: (1, 1)."""
    B, K = x.shape
    K2, N = weight.shape
    assert K == K2, (K, K2)
    s = jnp.asarray(s, dtype=jnp.float32).reshape(1, 1)

    phys_vmem = _vmem_capacity_bytes()
    if tn is None:
        # v5e/v6e (128 MiB VMEM) can afford wider output tiles than v7x (64 MiB).
        tn = 1024 if phys_vmem >= (100 << 20) else 512

    # Tile sizes: sublane-aligned batch tile, lane-dense (128-multiple) K/N tiles.
    tm = min(tm, _round_up(B, 8))
    tn = min(tn, _round_up(N, 128))
    tk = min(tk, _round_up(K, 128))

    Mp, Kp, Np = _round_up(B, tm), _round_up(K, tk), _round_up(N, tn)
    if (Mp, Kp) != (B, K):
        x = jnp.pad(x, ((0, Mp - B), (0, Kp - K)))
    if (Kp, Np) != (K, N):
        weight = jnp.pad(weight, ((0, Kp - K), (0, Np - N)))

    n_t, m_t, k_t = Np // tn, Mp // tm, Kp // tk

    # VMEM budget: physical capacity minus pipeline/compiler headroom.
    cap = max(phys_vmem - (12 << 20), 32 << 20)
    # Double-buffered x/out tiles + f32 accumulator (+ slack below for bf16 casts).
    base = 4 * (2 * tm * tk + 2 * tm * tn + tm * tn)
    need_per_k = base + 4 * (2 * tk * tn)
    need_full_k = base + 4 * (2 * Kp * tn)

    # Fetch W once per n-stripe (instead of once per (m, k) step) when the batch
    # spans several tiles and the whole-K stripe fits the VMEM budget.
    full_k_w = (m_t > 1) and (need_full_k + (4 << 20) <= cap)
    need = need_full_k if full_k_w else need_per_k
    vmem_limit = int(min(max(need + (4 << 20), 32 << 20), cap))

    if full_k_w:
        w_spec = pl.BlockSpec((Kp, tn), lambda n, m, k: (0, n))
        w_bytes = Kp * Np * 4
    else:
        w_spec = pl.BlockSpec((tk, tn), lambda n, m, k: (k, n))
        w_bytes = m_t * Kp * Np * 4

    cost = pl.CostEstimate(
        flops=2 * Mp * Kp * Np,
        transcendentals=n_t * m_t * k_t,  # one sigmoid per grid step
        bytes_accessed=n_t * Mp * Kp * 4 + w_bytes + Mp * Np * 4,
    )

    kernel = functools.partial(
        _soft_threshold_matmul_kernel,
        tk=tk, full_k_w=full_k_w, dot_dtype=dot_dtype,
    )

    out = pl.pallas_call(
        kernel,
        out_shape=jax.ShapeDtypeStruct((Mp, Np), x.dtype),
        grid_spec=pltpu.PrefetchScalarGridSpec(
            num_scalar_prefetch=0,
            grid=(n_t, m_t, k_t),  # n outer, m middle, k (reduction) last
            in_specs=[
                pl.BlockSpec(memory_space=pltpu.SMEM),            # s (scalar)
                pl.BlockSpec((tm, tk), lambda n, m, k: (m, k)),   # x
                w_spec,                                           # W
            ],
            out_specs=pl.BlockSpec((tm, tn), lambda n, m, k: (m, n)),
            scratch_shapes=[
                pltpu.VMEM((tm, tn), jnp.float32),  # f32 accumulator
            ],
        ),
        compiler_params=pltpu.CompilerParams(
            dimension_semantics=("parallel", "parallel", "arbitrary"),
            vmem_limit_bytes=vmem_limit,
        ),
        cost_estimate=cost,
    )(s, x, weight)

    if (Mp, Np) != (B, N):
        out = out[:B, :N]
    return out


def _reference(x, weight, s):
    thr = jax.nn.sigmoid(s[0, 0])
    sparse_w = jnp.sign(weight) * jnp.maximum(jnp.abs(weight) - thr, 0.0)
    return x @ sparse_w


if __name__ == "__main__":
    key = jax.random.PRNGKey(0)
    k_x1, k_w1, k_x2, k_w2, k_x3, k_w3 = jax.random.split(key, 6)

    # s_init = -2.0 -> threshold sigmoid(-2) ~ 0.119 (module's s_init option)
    s = jnp.full((1, 1), -2.0, dtype=jnp.float32)

    # Case 1: small, un-aligned layer (padding + lane-dense output, per-k W path,
    # f32 dot for a tight check against the exact module semantics).
    batch, in_features, out_features = 6, 48, 40
    std = (2.0 / out_features) ** 0.5  # ~kaiming_normal_ (fan_in) scale
    w1 = std * jax.random.normal(k_w1, (in_features, out_features), jnp.float32)
    x1 = jax.random.normal(k_x1, (batch, in_features), jnp.float32)

    out1 = jax.block_until_ready(
        soft_threshold_layer(x1, w1, s, dot_dtype=jnp.float32))
    ref1 = _reference(x1, w1, s)
    assert out1.shape == (batch, out_features)
    assert jnp.allclose(out1, ref1, atol=5e-4, rtol=5e-4), "case 1 mismatch"

    # Case 2: tiny tiles force a 3x3x3 grid: exercises the K accumulator, padding
    # on every axis, the one-pass (whole-K) W path (m_t > 1) and the bf16 dot.
    batch, in_features, out_features = 24, 300, 260
    std = (2.0 / out_features) ** 0.5
    w2 = std * jax.random.normal(k_w2, (in_features, out_features), jnp.float32)
    x2 = jax.random.normal(k_x2, (batch, in_features), jnp.float32)

    out2 = jax.block_until_ready(
        soft_threshold_layer(x2, w2, s, tm=8, tn=128, tk=128))
    ref2 = _reference(x2, w2, s)
    assert out2.shape == (batch, out_features)
    assert jnp.allclose(out2, ref2, atol=2e-2, rtol=2e-2), "case 2 mismatch"

    # Case 3: aligned shapes with default tiles / bf16 dot (no padding, no slice).
    batch, in_features, out_features = 128, 256, 256
    std = (2.0 / out_features) ** 0.5
    w3 = std * jax.random.normal(k_w3, (in_features, out_features), jnp.float32)
    x3 = jax.random.normal(k_x3, (batch, in_features), jnp.float32)

    out3 = jax.block_until_ready(soft_threshold_layer(x3, w3, s))
    ref3 = _reference(x3, w3, s)
    assert out3.shape == (batch, out_features)
    assert jnp.allclose(out3, ref3, atol=2e-2, rtol=2e-2), "case 3 mismatch"

    print("KERNEL_OK")
</pallas_src>

<mosaic_0001>
module attributes {stable_mosaic.version = 11 : i64} {
  func.func @_soft_threshold_matmul_kernel(%arg0: i32, %arg1: i32, %arg2: i32, %arg3: memref<1x1xf32, #tpu.memory_space<smem>>, %arg4: memref<8x128xf32, #tpu.memory_space<vmem>>, %arg5: memref<128x128xf32, #tpu.memory_space<vmem>>, %arg6: memref<8x128xf32, #tpu.memory_space<vmem>>, %arg7: memref<8x128xf32, #tpu.memory_space<vmem>>) attributes {dimension_semantics = [#tpu.dimension_semantics<parallel>, #tpu.dimension_semantics<parallel>, #tpu.dimension_semantics<arbitrary>], iteration_bounds = array<i64: 1, 1, 1>, scalar_prefetch = 0 : i64, scratch_operands = 1 : i64, tpu.core_type = #tpu.core_type<tc>, window_params = [{transform_indices = @transform_0, window_bounds = array<i64: 1, 1>}, {transform_indices = @transform_1, window_bounds = array<i64: 8, 128>}, {transform_indices = @transform_2, window_bounds = array<i64: 128, 128>}, {transform_indices = @transform_3, window_bounds = array<i64: 8, 128>}]} {
    %c0_i32 = arith.constant 0 : i32
    %0 = arith.cmpi eq, %arg2, %c0_i32 : i32
    %1 = arith.extui %0 : i1 to i32
    %c0_i32_0 = arith.constant 0 : i32
    %2 = arith.cmpi ne, %1, %c0_i32_0 : i32
    scf.if %2 {
      %cst_14 = arith.constant 0.000000e+00 : f32
      %23 = vector.broadcast %cst_14 : f32 to vector<8x128xf32>
      %c0_15 = arith.constant 0 : index
      %c0_16 = arith.constant 0 : index
      %24 = vector.load %arg7[%c0_15, %c0_16] : memref<8x128xf32, #tpu.memory_space<vmem>>, vector<8x128xf32>
      tpu.vector_store %arg7[%c0_15, %c0_16], %23 {strides = array<i32>} : memref<8x128xf32, #tpu.memory_space<vmem>>, vector<8x128xf32>,
    } else {
    }
    %c0 = arith.constant 0 : index
    %c0_1 = arith.constant 0 : index
    %3 = memref.load %arg3[%c0, %c0_1] : memref<1x1xf32, #tpu.memory_space<smem>>
    %4 = arith.negf %3 : f32
    %5 = math.exp %4 : f32
    %cst = arith.constant 1.000000e+00 : f32
    %6 = arith.addf %cst, %5 : f32
    %7 = arith.divf %cst, %6 : f32
    %c0_2 = arith.constant 0 : index
    %c0_3 = arith.constant 0 : index
    %8 = vector.load %arg5[%c0_2, %c0_3] : memref<128x128xf32, #tpu.memory_space<vmem>>, vector<128x128xf32>
    %cst_4 = arith.constant 0.000000e+00 : f32
    %9 = arith.subf %cst_4, %7 : f32
    %10 = vector.broadcast %9 : f32 to vector<128x128xf32>
    %11 = arith.maximumf %10, %8 : vector<128x128xf32>
    %12 = vector.broadcast %7 : f32 to vector<128x128xf32>
    %13 = arith.minimumf %12, %11 : vector<128x128xf32>
    %14 = arith.subf %8, %13 : vector<128x128xf32>
    %c0_5 = arith.constant 0 : index
    %c0_6 = arith.constant 0 : index
    %15 = vector.load %arg7[%c0_5, %c0_6] : memref<8x128xf32, #tpu.memory_space<vmem>>, vector<8x128xf32>
    %c0_7 = arith.constant 0 : index
    %c0_8 = arith.constant 0 : index
    %16 = vector.load %arg4[%c0_7, %c0_8] : memref<8x128xf32, #tpu.memory_space<vmem>>, vector<8x128xf32>
    %cst_9 = arith.constant dense<0.000000e+00> : vector<8x128xf32>
    %17 = tpu.matmul %16, %14, %cst_9 {dimension_numbers = #tpu.dot_dimension_numbers<[1], [0], [0], [1], [0, 0, 1, 1], [], []>} : vector<8x128xf32>, vector<128x128xf32>, vector<8x128xf32> -> vector<8x128xf32>
    %18 = arith.addf %15, %17 : vector<8x128xf32>
    %c0_10 = arith.constant 0 : index
    %c0_11 = arith.constant 0 : index
    %19 = vector.load %arg7[%c0_10, %c0_11] : memref<8x128xf32, #tpu.memory_space<vmem>>, vector<8x128xf32>
    tpu.vector_store %arg7[%c0_10, %c0_11], %18 {strides = array<i32>} : memref<8x128xf32, #tpu.memory_space<vmem>>, vector<8x128xf32>,
    %c0_i32_12 = arith.constant 0 : i32
    %20 = arith.cmpi eq, %arg2, %c0_i32_12 : i32
    %21 = arith.extui %20 : i1 to i32
    %c0_i32_13 = arith.constant 0 : i32
    %22 = arith.cmpi ne, %21, %c0_i32_13 : i32
    scf.if %22 {
      %c0_14 = arith.constant 0 : index
      %c0_15 = arith.constant 0 : index
      %23 = vector.load %arg7[%c0_14, %c0_15] : memref<8x128xf32, #tpu.memory_space<vmem>>, vector<8x128xf32>
      %c0_16 = arith.constant 0 : index
      %c0_17 = arith.constant 0 : index
      %24 = vector.load %arg6[%c0_16, %c0_17] : memref<8x128xf32, #tpu.memory_space<vmem>>, vector<8x128xf32>
      tpu.vector_store %arg6[%c0_16, %c0_17], %23 {strides = array<i32>} : memref<8x128xf32, #tpu.memory_space<vmem>>, vector<8x128xf32>,
    } else {
    }
    return
  }
  func.func @transform_0(%arg0: i32, %arg1: i32, %arg2: i32) -> (i32, i32) {
    %c0_i32 = arith.constant 0 : i32
    %c0_i32_0 = arith.constant 0 : i32
    %c0_i32_1 = arith.constant 0 : i32
    return %c0_i32, %c0_i32_0 : i32, i32
  }
  func.func @transform_1(%arg0: i32, %arg1: i32, %arg2: i32) -> (i32, i32) {
    %c0_i32 = arith.constant 0 : i32
    return %arg1, %arg2 : i32, i32
  }
  func.func @transform_2(%arg0: i32, %arg1: i32, %arg2: i32) -> (i32, i32) {
    %c0_i32 = arith.constant 0 : i32
    return %arg2, %arg0 : i32, i32
  }
  func.func @transform_3(%arg0: i32, %arg1: i32, %arg2: i32) -> (i32, i32) {
    %c0_i32 = arith.constant 0 : i32
    return %arg1, %arg0 : i32, i32
  }
}

</mosaic_0001>

<llo_original>
// kernel: tpu_custom_call.1
$region0: #{tpu_custom_call.1}
  #allocation0 [shape = 'u32[]', space=smem, size = 0x4, offset = 0x4, fixed_abs, tag = 'smem constant byte address 0x4 - core index']
  #allocation1 [shape = 'u32[72,128]{1,0:T(1,128)}', space=vmem, size = 0x9000, scoped, tag = 'internal scratch']
  #allocation2 [shape = 'f32[8,128]{1,0:T(8,128)}', space=vmem, size = 0x1000, scoped, tag = 'scratch operand']
  #allocation3 [shape = 'f32[1,1]{1,0:T(1,128)S(6)}', space=smem, size = 0x200, scoped, tag = 'scoped memory for tpu_custom_call.1']
  %s0 = inlined_call_operand.<no memory space> [shape: f32[1,1], index: 0, kind: input, shape index: {}]
  %s1 = inlined_call_operand.hbm [shape: f32[8,128], index: 1, kind: input, shape index: {}]
  %s2 = inlined_call_operand.hbm [shape: f32[128,128], index: 2, kind: input, shape index: {}]
  %s3 = inlined_call_operand.hbm [shape: f32[8,128], index: 3, kind: output, shape index: {}]
  %s4 = sld [smem:[#allocation0]]
  $region38: #{tpu_custom_call.1} parent=0
    _
  %s6 = ssub.s32 1, %s4
  %s7 = scalar_select 0, %s6, %s4
  %8 = sst [smem:[#allocation3]] %s0
  $region1: #{tpu_custom_call.1} parent=0
    #allocation4 [shape = 'u8[4096]{0}', space=vmem, size = 0x1000, scoped, tag = 'input window, operand 1, single buffered']
    #allocation5 [shape = 's32[1]{0}', space=sflag, size = 0x4, scoped, tag = 'scoped memory for tpu_custom_call.1']
    #allocation6 [shape = 's32[1]{0}', space=sflag, size = 0x4, scoped, tag = 'scoped memory for tpu_custom_call.1']
    #allocation7 [shape = 'u8[65536]{0}', space=vmem, size = 0x10000, scoped, tag = 'input window, operand 2, single buffered']
    #allocation8 [shape = 's32[1]{0}', space=sflag, size = 0x4, scoped, tag = 'scoped memory for tpu_custom_call.1']
    #allocation9 [shape = 'u8[4096]{0}', space=vmem, size = 0x1000, scoped, tag = 'output window, operand 0, single buffered']
    %9 = vsyncpa [#allocation5], 0
    %10 = vsyncpa [#allocation8], 0
    %11 = vsyncpa [#allocation6], 0
    // Predicated region
    $region2: #{tpu_custom_call.1} parent=1 // pred_check
      _
    $region3: #{tpu_custom_call.1} parent=1 // pred_check_branch
      %13 = sbr.rel (0) target = $region5
    $region4: #{tpu_custom_call.1} parent=1 // pred_region
      _
    $region5: #{tpu_custom_call.1} parent=1 // pred_fallthru
      _
    // Predicated region
    $region6: #{tpu_custom_call.1} parent=1 // pred_check
      _
    $region7: #{tpu_custom_call.1} parent=1 // pred_check_branch
      %15 = sbr.rel (0) target = $region9
    $region8: #{tpu_custom_call.1} parent=1 // pred_region
      %17 = vsyncadd [#allocation5], 0
      %s19 = sshll.u32 %s1, 4
      %s20 = int_to_ptr.hbm [resolvable:$true] %s19
      %s21 = sshll.u32 [#allocation4], 4
      %s22 = int_to_ptr.vmem [resolvable:$true] %s21
      %24 = dma.hbm_to_vmem [thread:$0]  %s20, 128, %s22, [#allocation5]
    $region9: #{tpu_custom_call.1} parent=1 // pred_fallthru
      _
    // Predicated region
    $region10: #{tpu_custom_call.1} parent=1 // pred_check
      _
    $region11: #{tpu_custom_call.1} parent=1 // pred_check_branch
      %26 = sbr.rel (0) target = $region13
    $region12: #{tpu_custom_call.1} parent=1 // pred_region
      %28 = vsyncadd [#allocation8], 0
      %s29 = sshll.u32 %s2, 4
      %s30 = int_to_ptr.hbm [resolvable:$true] %s29
      %s31 = sshll.u32 [#allocation7], 4
      %s32 = int_to_ptr.vmem [resolvable:$true] %s31
      %37 = dma.hbm_to_vmem [thread:$0]  %s30, 2048, %s32, [#allocation8], 128, 128, 8
    $region13: #{tpu_custom_call.1} parent=1 // pred_fallthru
      _
    // Predicated region
    $region14: #{tpu_custom_call.1} parent=1 // pred_check
      _
    $region15: #{tpu_custom_call.1} parent=1 // pred_check_branch
      %39 = sbr.rel (0) target = $region17
    $region16: #{tpu_custom_call.1} parent=1 // pred_region
      %41 = dma.done [#allocation5], 128
    $region17: #{tpu_custom_call.1} parent=1 // pred_fallthru
      _
    // Predicated region
    $region18: #{tpu_custom_call.1} parent=1 // pred_check
      _
    $region19: #{tpu_custom_call.1} parent=1 // pred_check_branch
      %43 = sbr.rel (0) target = $region21
    $region20: #{tpu_custom_call.1} parent=1 // pred_region
      %45 = dma.done [#allocation8], 2048
    $region21: #{tpu_custom_call.1} parent=1 // pred_fallthru
      _
    %p46 = scmp.eq.s32.totalorder 0, 0
    // Predicated region
    $region22: #{tpu_custom_call.1} parent=1 // pred_check
      %p47 = pneg %p46
    $region23: #{tpu_custom_call.1} parent=1 // pred_check_branch
      %49 = sbr.rel (%p47) target = $region25
    $region24: #{tpu_custom_call.1} parent=1 // pred_region
      %50 = vst [vmem:[#allocation2] sm:$0xff] 0.0
    $region25: #{tpu_custom_call.1} parent=1 // pred_fallthru
      _
    %s51 = sld [smem:[#allocation3]]
    %s52 = sxor.u32 %s51, 2147483648
    %v53 = vstv %s52
    %v54 = vmul.f32 %v53, 1.442695
    %v55 = vpow.pop %v54
    %s56 = vtos %v55
    %s57 = sadd.f32 %s56, 1.0
    %v58 = vstv %s57
    %v59 = vrcp.pop %v58
    %v60 = vmul.f32 %v58, %v59
    %v61 = vsub.f32 1.0, %v60
    %v62 = vmul.f32 %v59, %v61
    %v63 = vadd.f32 %v59, %v62
    %vm64 = vweird.f32 %v58
    %vm65 = vweird.f32 %v59
    %vm66 = vmor %vm64, %vm65
    %v67 = vsel %vm66, %v59, %v63
    %v68 = vand.u32 2147483647, %v58
    %vm69 = vcmp.eq.f32.partialorder %v68, 8.507059e+37
    %v70 = vand.u32 %v58, 2147483648
    %v71 = vor.u32 1.1754944e-38, %v70
    %v72 = vsel %vm69, %v71, %v67
    %s73 = vtos %v72
    %v74 = vld [vmem:[#allocation7] sm:$0xff]
    %v75 = vld [vmem:[#allocation7 + $0x8] sm:$0xff]
    %v76 = vld [vmem:[#allocation7 + $0x10] sm:$0xff]
    %v77 = vld [vmem:[#allocation7 + $0x18] sm:$0xff]
    %v78 = vld [vmem:[#allocation7 + $0x20] sm:$0xff]
    %v79 = vld [vmem:[#allocation7 + $0x28] sm:$0xff]
    %v80 = vld [vmem:[#allocation7 + $0x30] sm:$0xff]
    %v81 = vld [vmem:[#allocation7 + $0x38] sm:$0xff]
    %v82 = vld [vmem:[#allocation7 + $0x40] sm:$0xff]
    %v83 = vld [vmem:[#allocation7 + $0x48] sm:$0xff]
    %v84 = vld [vmem:[#allocation7 + $0x50] sm:$0xff]
    %v85 = vld [vmem:[#allocation7 + $0x58] sm:$0xff]
    %v86 = vld [vmem:[#allocation7 + $0x60] sm:$0xff]
    %v87 = vld [vmem:[#allocation7 + $0x68] sm:$0xff]
    %v88 = vld [vmem:[#allocation7 + $0x70] sm:$0xff]
    %v89 = vld [vmem:[#allocation7 + $0x78] sm:$0xff]
    %s90 = ssub.f32 0.0, %s73
    %v91 = vstv %s90
    %v92 = vmax.f32 %v91, %v74
    %v93 = vmax.f32 %v91, %v75
    %v94 = vmax.f32 %v91, %v76
    %v95 = vmax.f32 %v91, %v77
    %v96 = vmax.f32 %v91, %v78
    %v97 = vmax.f32 %v91, %v79
    %v98 = vmax.f32 %v91, %v80
    %v99 = vmax.f32 %v91, %v81
    %v100 = vmax.f32 %v91, %v82
    %v101 = vmax.f32 %v91, %v83
    %v102 = vmax.f32 %v91, %v84
    %v103 = vmax.f32 %v91, %v85
    %v104 = vmax.f32 %v91, %v86
    %v105 = vmax.f32 %v91, %v87
    %v106 = vmax.f32 %v91, %v88
    %v107 = vmax.f32 %v91, %v89
    %v108 = vstv %s73
    %v109 = vmin.f32 %v108, %v92
    %v110 = vmin.f32 %v108, %v93
    %v111 = vmin.f32 %v108, %v94
    %v112 = vmin.f32 %v108, %v95
    %v113 = vmin.f32 %v108, %v96
    %v114 = vmin.f32 %v108, %v97
    %v115 = vmin.f32 %v108, %v98
    %v116 = vmin.f32 %v108, %v99
    %v117 = vmin.f32 %v108, %v100
    %v118 = vmin.f32 %v108, %v101
    %v119 = vmin.f32 %v108, %v102
    %v120 = vmin.f32 %v108, %v103
    %v121 = vmin.f32 %v108, %v104
    %v122 = vmin.f32 %v108, %v105
    %v123 = vmin.f32 %v108, %v106
    %v124 = vmin.f32 %v108, %v107
    %v125 = vsub.f32 %v74, %v109
    %v126 = vsub.f32 %v75, %v110
    %v127 = vsub.f32 %v76, %v111
    %v128 = vsub.f32 %v77, %v112
    %v129 = vsub.f32 %v78, %v113
    %v130 = vsub.f32 %v79, %v114
    %v131 = vsub.f32 %v80, %v115
    %v132 = vsub.f32 %v81, %v116
    %v133 = vsub.f32 %v82, %v117
    %v134 = vsub.f32 %v83, %v118
    %v135 = vsub.f32 %v84, %v119
    %v136 = vsub.f32 %v85, %v120
    %v137 = vsub.f32 %v86, %v121
    %v138 = vsub.f32 %v87, %v122
    %v139 = vsub.f32 %v88, %v123
    %v140 = vsub.f32 %v89, %v124
    %v141 = vld [vmem:[#allocation2] sm:$0xff]
    %v142 = vld [vmem:[#allocation4] sm:$0xff]
    %143 = vmatpush.msra.mxu0 %v140
    %144 = vmatpush.msra.mxu0 %v139
    %145 = vmatpush.msra.mxu0 %v138
    %146 = vmatpush.msra.mxu0 %v137
    %147 = vmatpush.msra.mxu0 %v136
    %148 = vmatpush.msra.mxu0 %v135
    %149 = vmatpush.msra.mxu0 %v134
    %150 = vmatpush.msra.mxu0 %v133
    %151 = vmatpush.msra.mxu0 %v132
    %152 = vmatpush.msra.mxu0 %v131
    %153 = vmatpush.msra.mxu0 %v130
    %154 = vmatpush.msra.mxu0 %v129
    %155 = vmatpush.msra.mxu0 %v128
    %156 = vmatpush.msra.mxu0 %v127
    %157 = vmatpush.msra.mxu0 %v126
    %158 = vmatpush.msra.mxu0 %v125
    %159 = vmatmul.f32.gmra.mxu0 %v142
    %v160 = vpop.f32.mrf.mxu0
    %v161 = vadd.f32 0.0, %v160
    %162 = vdwg.mxu0
    %v163 = vadd.f32 %v141, %v161
    %164 = vst [vmem:[#allocation2] sm:$0xff] %v163
    // Predicated region
    $region26: #{tpu_custom_call.1} parent=1 // pred_check
      %p165 = pneg %p46
    $region27: #{tpu_custom_call.1} parent=1 // pred_check_branch
      %167 = sbr.rel (%p165) target = $region29
    $region28: #{tpu_custom_call.1} parent=1 // pred_region
      %v168 = vld [vmem:[#allocation2] sm:$0xff]
      %169 = vst [vmem:[#allocation9] sm:$0xff] %v168
    $region29: #{tpu_custom_call.1} parent=1 // pred_fallthru
      _
    // Predicated region
    $region30: #{tpu_custom_call.1} parent=1 // pred_check
      _
    $region31: #{tpu_custom_call.1} parent=1 // pred_check_branch
      %171 = sbr.rel (0) target = $region33
    $region32: #{tpu_custom_call.1} parent=1 // pred_region
      %173 = vsyncadd [#allocation6], 0
      %s175 = sshll.u32 [#allocation9], 4
      %s176 = int_to_ptr.vmem [resolvable:$true] %s175
      %s177 = sshll.u32 %s3, 4
      %s178 = int_to_ptr.hbm [resolvable:$true] %s177
      %180 = dma.vmem_to_hbm [thread:$0]  %s176, 128, %s178, [#allocation6]
    $region33: #{tpu_custom_call.1} parent=1 // pred_fallthru
      _
    // Predicated region
    $region34: #{tpu_custom_call.1} parent=1 // pred_check
      _
    $region35: #{tpu_custom_call.1} parent=1 // pred_check_branch
      %182 = sbr.rel (0) target = $region37
    $region36: #{tpu_custom_call.1} parent=1 // pred_region
      %184 = dma.done [#allocation6], 128
    $region37: #{tpu_custom_call.1} parent=1 // pred_fallthru
      _
    %185 = vsyncpa [#allocation5], 1
    %186 = vsyncpa [#allocation8], 1
    %187 = vsyncpa [#allocation6], 1

</llo_original>
